<compile_context>
chip_gen: v6e
topology: v6e:2x2x1
jax: 0.10.0
libtpu: 0.0.40
codegen_flags: <defaults>
</compile_context>

<pallas_src>
import functools

import jax
import jax.numpy as jnp
from jax.experimental import pallas as pl
from jax.experimental.pallas import tpu as pltpu


def _round_up(x: int, m: int) -> int:
    return (x + m - 1) // m * m


# ----------------------------------------------------------------------------
# Pallas kernel
# ----------------------------------------------------------------------------
def classifier_head_kernel(favor, emb_ref, mask_ref, w_ref, b_ref, out_ref,
                           sum_ref, cnt_ref):
    """Grid = (B blocks [parallel], S blocks [arbitrary / reduction, last])."""
    si = pl.program_id(1)

    @pl.when(si == 0)
    def _init():
        sum_ref[...] = jnp.zeros_like(sum_ref)
        cnt_ref[...] = jnp.zeros_like(cnt_ref)

    tok = emb_ref[...]            # (2, Bt, St, H) bf16  [0]=premise, [1]=conclusion
    msk = mask_ref[...]           # (2, Bt, St)    f32
    g, bt, st, h = tok.shape
    tok2 = tok.reshape(g * bt, st, h)        # leading-dim merge, layout-free
    msk2 = msk.reshape(g * bt, st)

    # Masked-sum pooling on the MXU: (2Bt,1,St) @ (2Bt,St,H) -> (2Bt,1,H), f32 accum.
    part = jnp.einsum(
        "bqs,bsh->bqh",
        msk2[:, None, :].astype(tok2.dtype),
        tok2,
        preferred_element_type=jnp.float32,
    )
    sum_ref[...] += part[:, 0, :]                                   # (2Bt, H)
    cnt_ref[...] += jnp.sum(msk2, axis=-1, keepdims=True)           # (2Bt, 1)

    @pl.when(si == pl.num_programs(1) - 1)
    def _finalize():
        # masked mean: sum / clamp(count, min=1e-9)   (nn.Dropout = identity in eval)
        inv_cnt = pl.reciprocal(jnp.maximum(cnt_ref[...], 1e-9), approx=False)
        pooled = sum_ref[...] * inv_cnt                             # (2Bt, H) f32
        # F.normalize(p=2, dim=1, eps=1e-12):  x * rsqrt(max(||x||^2, eps^2))
        sq = jnp.sum(pooled * pooled, axis=-1, keepdims=True)
        pooled = pooled * jax.lax.rsqrt(jnp.maximum(sq, 1e-24))
        prem = pooled[:bt]                                          # (Bt, H)
        conc = pooled[bt:]                                          # (Bt, H)
        # stance is a compile-time Python constant -> emit sub/add directly.
        stance = conc - prem if favor else conc + prem
        out_ref[...] = (
            jnp.dot(stance, w_ref[...], preferred_element_type=jnp.float32)
            + b_ref[...]
        )


# ----------------------------------------------------------------------------
# Wrapper: layout plumbing + pallas_call
# ----------------------------------------------------------------------------
def transformer_classifier_head(prem_emb, prem_mask, conc_emb, conc_mask,
                                weight, bias, stance: str):
    """Everything after the backbone, in one Pallas kernel.

    prem_emb / conc_emb: (B, S, H) token embeddings from the backbone.
    weight: (C, H) nn.Linear layout; bias: (C,).
    """
    B, S, H = prem_emb.shape
    C = weight.shape[0]
    favor = (stance == "in favor of")

    # Lane/sublane-dense layouts.
    H_pad = _round_up(H, 128)
    C_pad = _round_up(C, 128)
    B_pad = _round_up(B, 8)

    # Tiling. B tile: whole (padded) batch when small, else 8-row blocks the two v7x
    # TensorCores can split. S tile: reduction axis; must be a multiple of 128 (mask
    # lane axis) or the full sequence (toy case).
    b_tile = B_pad if B_pad <= 64 else 8
    if S % 512 == 0:
        s_tile = 512
    elif S % 128 == 0:
        s_tile = 128
    else:
        s_tile = S
    nb = B_pad // b_tile
    ns = S // s_tile

    # Stack premise+conclusion, ship as bf16, zero-pad B and H (zero padding is exact:
    # padded tokens/dims contribute nothing to sums, norms, or the head matmul).
    emb = jnp.stack([prem_emb, conc_emb], axis=0).astype(jnp.bfloat16)
    emb = jnp.pad(emb, ((0, 0), (0, B_pad - B), (0, 0), (0, H_pad - H)))
    mask = jnp.stack([prem_mask, conc_mask], axis=0).astype(jnp.float32)
    mask = jnp.pad(mask, ((0, 0), (0, B_pad - B), (0, 0)))

    w_pad = jnp.zeros((H_pad, C_pad), jnp.float32).at[:H, :C].set(
        weight.T.astype(jnp.float32))
    b_pad = jnp.zeros((1, C_pad), jnp.float32).at[:, :C].set(
        bias.reshape(1, C).astype(jnp.float32))

    cost = pl.CostEstimate(
        flops=2 * 2 * B_pad * S * H_pad + 2 * B_pad * H_pad * C_pad,
        transcendentals=2 * B_pad,
        bytes_accessed=int(emb.size * 2 + mask.size * 4 + w_pad.size * 4
                           + b_pad.size * 4 + B_pad * C_pad * 4),
    )

    out = pl.pallas_call(
        functools.partial(classifier_head_kernel, favor),
        out_shape=jax.ShapeDtypeStruct((B_pad, C_pad), jnp.float32),
        grid_spec=pltpu.PrefetchScalarGridSpec(
            num_scalar_prefetch=0,
            grid=(nb, ns),                                # reduction axis (S) last
            in_specs=[
                pl.BlockSpec((2, b_tile, s_tile, H_pad), lambda bi, si: (0, bi, si, 0)),
                pl.BlockSpec((2, b_tile, s_tile), lambda bi, si: (0, bi, si)),
                pl.BlockSpec((H_pad, C_pad), lambda bi, si: (0, 0)),
                pl.BlockSpec((1, C_pad), lambda bi, si: (0, 0)),
            ],
            out_specs=pl.BlockSpec((b_tile, C_pad), lambda bi, si: (bi, 0)),
            scratch_shapes=[
                pltpu.VMEM((2 * b_tile, H_pad), jnp.float32),   # pooled-sum accumulator
                pltpu.VMEM((2 * b_tile, 1), jnp.float32),       # mask-count accumulator
            ],
        ),
        compiler_params=pltpu.CompilerParams(
            dimension_semantics=("parallel", "arbitrary"),
            vmem_limit_bytes=32 * 1024 * 1024,
        ),
        cost_estimate=cost,
    )(emb, mask, w_pad, b_pad)

    return out[:B, :C]


# ----------------------------------------------------------------------------
# Synthetic backbone (stand-in for the external PreTrainedModel)
# ----------------------------------------------------------------------------
# TODO(synk): the real backbone is an external HuggingFace PreTrainedModel; a tiny
# deterministic embedding + dense encoder stands in to produce token embeddings.
def synthetic_backbone(input_ids, attention_mask, params):
    emb = params["embedding"][input_ids]                       # (B, S, H)
    h = jnp.tanh(emb @ params["w_enc"] + params["b_enc"])      # (B, S, H)
    return h * attention_mask[:, :, None]


# ----------------------------------------------------------------------------
# Pure-JAX reference of the module forward (correctness check)
# ----------------------------------------------------------------------------
def reference_forward(prem_emb, prem_mask, conc_emb, conc_mask, weight, bias, stance):
    def pool(tok, mask):
        m = mask[:, :, None]
        return jnp.sum(tok * m, axis=1) / jnp.maximum(jnp.sum(m, axis=1), 1e-9)

    def norm(x):
        return x / jnp.maximum(jnp.sqrt(jnp.sum(x * x, axis=1, keepdims=True)), 1e-12)

    p = norm(pool(prem_emb, prem_mask))
    c = norm(pool(conc_emb, conc_mask))
    s = (c - p) if stance == "in favor of" else (c + p)
    return s @ weight.T + bias[None, :]


# ----------------------------------------------------------------------------
# Main
# ----------------------------------------------------------------------------
if __name__ == "__main__":
    B, S, H, C, VOCAB = 2, 8, 32, 4, 100
    key = jax.random.PRNGKey(0)
    k_emb, k_enc, k_w, k_b, k_pid, k_cid = jax.random.split(key, 6)

    # Deterministic backbone params.
    backbone_params = {
        "embedding": jax.random.normal(k_emb, (VOCAB, H), jnp.float32) * 0.02,
        "w_enc": jax.random.normal(k_enc, (H, H), jnp.float32) * 0.05,
        "b_enc": jnp.zeros((H,), jnp.float32),
    }

    # Classifier params: nn.Linear(H, C) with xavier_uniform_ weight.
    xavier_bound = (6.0 / (H + C)) ** 0.5
    weight = jax.random.uniform(k_w, (C, H), jnp.float32, -xavier_bound, xavier_bound)
    bias_bound = 1.0 / (H ** 0.5)
    bias = jax.random.uniform(k_b, (C,), jnp.float32, -bias_bound, bias_bound)

    # Deterministic inputs (token ids + attention masks with ragged lengths).
    premise_input_ids = jax.random.randint(k_pid, (B, S), 0, VOCAB)
    conclusion_input_ids = jax.random.randint(k_cid, (B, S), 0, VOCAB)
    prem_lens = jnp.array([6, 8])
    conc_lens = jnp.array([5, 7])
    pos = jnp.arange(S)[None, :]
    premise_attention_mask = (pos < prem_lens[:, None]).astype(jnp.float32)
    conclusion_attention_mask = (pos < conc_lens[:, None]).astype(jnp.float32)

    # Backbone (plain JAX glue).
    prem_emb = synthetic_backbone(premise_input_ids, premise_attention_mask, backbone_params)
    conc_emb = synthetic_backbone(conclusion_input_ids, conclusion_attention_mask, backbone_params)

    # Reference consumes the same bf16-quantized activations the kernel is fed.
    prem_q = prem_emb.astype(jnp.bfloat16).astype(jnp.float32)
    conc_q = conc_emb.astype(jnp.bfloat16).astype(jnp.float32)

    # TODO(synk): only the pooling=True / normalization=True path of the module is
    # implemented; pooling=False relies on the backbone's own pooler_output.
    for stance in ("in favor of", "against"):
        out = transformer_classifier_head(
            prem_emb, premise_attention_mask, conc_emb, conclusion_attention_mask,
            weight, bias, stance)
        out = jax.block_until_ready(out)

        ref = reference_forward(
            prem_q, premise_attention_mask, conc_q, conclusion_attention_mask,
            weight, bias, stance)

        assert out.shape == (B, C)
        assert jnp.allclose(out, ref, atol=1e-4, rtol=1e-4), (stance, out, ref)

    print("KERNEL_OK")
</pallas_src>

<mosaic_0001>
module attributes {stable_mosaic.version = 11 : i64} {
  func.func @classifier_head_kernel(%arg0: i32, %arg1: i32, %arg2: memref<2x8x8x128xbf16, #tpu.memory_space<vmem>>, %arg3: memref<2x8x8xf32, #tpu.memory_space<vmem>>, %arg4: memref<128x128xf32, #tpu.memory_space<vmem>>, %arg5: memref<1x128xf32, #tpu.memory_space<vmem>>, %arg6: memref<8x128xf32, #tpu.memory_space<vmem>>, %arg7: memref<16x128xf32, #tpu.memory_space<vmem>>, %arg8: memref<16x1xf32, #tpu.memory_space<vmem>>) attributes {dimension_semantics = [#tpu.dimension_semantics<parallel>, #tpu.dimension_semantics<arbitrary>], iteration_bounds = array<i64: 1, 1>, scalar_prefetch = 0 : i64, scratch_operands = 2 : i64, tpu.core_type = #tpu.core_type<tc>, window_params = [{transform_indices = @transform_0, window_bounds = array<i64: 2, 8, 8, 128>}, {transform_indices = @transform_1, window_bounds = array<i64: 2, 8, 8>}, {pipeline_mode = #tpu.pipeline_mode<synchronous>, transform_indices = @transform_2, window_bounds = array<i64: 128, 128>}, {pipeline_mode = #tpu.pipeline_mode<synchronous>, transform_indices = @transform_3, window_bounds = array<i64: 1, 128>}, {transform_indices = @transform_4, window_bounds = array<i64: 8, 128>}]} {
    %c0_i32 = arith.constant 0 : i32
    %0 = arith.cmpi eq, %arg1, %c0_i32 : i32
    %1 = arith.extui %0 : i1 to i32
    %c0_i32_0 = arith.constant 0 : i32
    %2 = arith.cmpi ne, %1, %c0_i32_0 : i32
    scf.if %2 {
      %cst_18 = arith.constant 0.000000e+00 : f32
      %22 = vector.broadcast %cst_18 : f32 to vector<16x128xf32>
      %c0_19 = arith.constant 0 : index
      %c0_20 = arith.constant 0 : index
      %23 = vector.load %arg7[%c0_19, %c0_20] : memref<16x128xf32, #tpu.memory_space<vmem>>, vector<16x128xf32>
      tpu.vector_store %arg7[%c0_19, %c0_20], %22 {strides = array<i32>} : memref<16x128xf32, #tpu.memory_space<vmem>>, vector<16x128xf32>,
      %cst_21 = arith.constant 0.000000e+00 : f32
      %24 = vector.broadcast %cst_21 : f32 to vector<16x1xf32>
      %c0_22 = arith.constant 0 : index
      %c0_23 = arith.constant 0 : index
      %25 = vector.load %arg8[%c0_22, %c0_23] : memref<16x1xf32, #tpu.memory_space<vmem>>, vector<16x1xf32>
      tpu.vector_store %arg8[%c0_22, %c0_23], %24 {strides = array<i32>} : memref<16x1xf32, #tpu.memory_space<vmem>>, vector<16x1xf32>,
    } else {
    }
    %c0 = arith.constant 0 : index
    %c0_1 = arith.constant 0 : index
    %c0_2 = arith.constant 0 : index
    %c0_3 = arith.constant 0 : index
    %3 = vector.load %arg2[%c0, %c0_1, %c0_2, %c0_3] : memref<2x8x8x128xbf16, #tpu.memory_space<vmem>>, vector<2x8x8x128xbf16>
    %c0_4 = arith.constant 0 : index
    %c0_5 = arith.constant 0 : index
    %c0_6 = arith.constant 0 : index
    %4 = vector.load %arg3[%c0_4, %c0_5, %c0_6] : memref<2x8x8xf32, #tpu.memory_space<vmem>>, vector<2x8x8xf32>
    %5 = vector.shape_cast %3 : vector<2x8x8x128xbf16> to vector<16x8x128xbf16>
    %6 = vector.shape_cast %4 : vector<2x8x8xf32> to vector<16x8xf32>
    %7 = vector.shape_cast %6 : vector<16x8xf32> to vector<16x1x8xf32>
    %8 = arith.truncf %7 : vector<16x1x8xf32> to vector<16x1x8xbf16>
    "tpu.trace_start"() <{level = 10 : i32, message = "bqs,bsh->bqh"}> : () -> ()
    %cst = arith.constant dense<0.000000e+00> : vector<16x1x128xf32>
    %9 = tpu.matmul %8, %5, %cst {dimension_numbers = #tpu.dot_dimension_numbers<[2], [1], [1], [2], [0, 0, 0, 1, 1, 2], [0], [0]>} : vector<16x1x8xbf16>, vector<16x8x128xbf16>, vector<16x1x128xf32> -> vector<16x1x128xf32>
    "tpu.trace_stop"() : () -> ()
    %c0_7 = arith.constant 0 : index
    %c0_8 = arith.constant 0 : index
    %10 = vector.load %arg7[%c0_7, %c0_8] : memref<16x128xf32, #tpu.memory_space<vmem>>, vector<16x128xf32>
    %11 = vector.shape_cast %9 : vector<16x1x128xf32> to vector<16x128xf32>
    %12 = arith.addf %10, %11 : vector<16x128xf32>
    %c0_9 = arith.constant 0 : index
    %c0_10 = arith.constant 0 : index
    %13 = vector.load %arg7[%c0_9, %c0_10] : memref<16x128xf32, #tpu.memory_space<vmem>>, vector<16x128xf32>
    tpu.vector_store %arg7[%c0_9, %c0_10], %12 {strides = array<i32>} : memref<16x128xf32, #tpu.memory_space<vmem>>, vector<16x128xf32>,
    %c0_11 = arith.constant 0 : index
    %c0_12 = arith.constant 0 : index
    %14 = vector.load %arg8[%c0_11, %c0_12] : memref<16x1xf32, #tpu.memory_space<vmem>>, vector<16x1xf32>
    %cst_13 = arith.constant dense<0.000000e+00> : vector<16xf32>
    %15 = vector.multi_reduction <add>, %6, %cst_13 [1] : vector<16x8xf32> to vector<16xf32>
    %16 = vector.shape_cast %15 : vector<16xf32> to vector<16x1xf32>
    %17 = arith.addf %14, %16 : vector<16x1xf32>
    %c0_14 = arith.constant 0 : index
    %c0_15 = arith.constant 0 : index
    %18 = vector.load %arg8[%c0_14, %c0_15] : memref<16x1xf32, #tpu.memory_space<vmem>>, vector<16x1xf32>
    tpu.vector_store %arg8[%c0_14, %c0_15], %17 {strides = array<i32>} : memref<16x1xf32, #tpu.memory_space<vmem>>, vector<16x1xf32>,
    %c0_i32_16 = arith.constant 0 : i32
    %19 = arith.cmpi eq, %arg1, %c0_i32_16 : i32
    %20 = arith.extui %19 : i1 to i32
    %c0_i32_17 = arith.constant 0 : i32
    %21 = arith.cmpi ne, %20, %c0_i32_17 : i32
    scf.if %21 {
      %c0_18 = arith.constant 0 : index
      %c0_19 = arith.constant 0 : index
      %22 = vector.load %arg8[%c0_18, %c0_19] : memref<16x1xf32, #tpu.memory_space<vmem>>, vector<16x1xf32>
      %cst_20 = arith.constant 9.99999971E-10 : f32
      %23 = vector.broadcast %cst_20 : f32 to vector<16x1xf32>
      %24 = arith.maximumf %22, %23 : vector<16x1xf32>
      %25 = tpu.reciprocal %24 : vector<16x1xf32> -> vector<16x1xf32>
      %c0_21 = arith.constant 0 : index
      %c0_22 = arith.constant 0 : index
      %26 = vector.load %arg7[%c0_21, %c0_22] : memref<16x128xf32, #tpu.memory_space<vmem>>, vector<16x128xf32>
      %27 = vector.broadcast %25 : vector<16x1xf32> to vector<16x128xf32>
      %28 = arith.mulf %26, %27 : vector<16x128xf32>
      %29 = arith.mulf %28, %28 : vector<16x128xf32>
      %cst_23 = arith.constant dense<0.000000e+00> : vector<16xf32>
      %30 = vector.multi_reduction <add>, %29, %cst_23 [1] : vector<16x128xf32> to vector<16xf32>
      %31 = vector.shape_cast %30 : vector<16xf32> to vector<16x1xf32>
      %cst_24 = arith.constant 1.000000e-24 : f32
      %32 = vector.broadcast %cst_24 : f32 to vector<16x1xf32>
      %33 = arith.maximumf %31, %32 : vector<16x1xf32>
      %34 = math.rsqrt %33 : vector<16x1xf32>
      %35 = vector.broadcast %34 : vector<16x1xf32> to vector<16x128xf32>
      %36 = arith.mulf %28, %35 : vector<16x128xf32>
      %37 = vector.extract_strided_slice %36 {offsets = [0, 0], sizes = [8, 128], strides = [1, 1]} : vector<16x128xf32> to vector<8x128xf32>
      %38 = vector.extract_strided_slice %36 {offsets = [8, 0], sizes = [8, 128], strides = [1, 1]} : vector<16x128xf32> to vector<8x128xf32>
      %39 = arith.subf %38, %37 : vector<8x128xf32>
      %c0_25 = arith.constant 0 : index
      %c0_26 = arith.constant 0 : index
      %40 = vector.load %arg4[%c0_25, %c0_26] : memref<128x128xf32, #tpu.memory_space<vmem>>, vector<128x128xf32>
      %cst_27 = arith.constant dense<0.000000e+00> : vector<8x128xf32>
      %41 = tpu.matmul %39, %40, %cst_27 {dimension_numbers = #tpu.dot_dimension_numbers<[1], [0], [0], [1], [0, 0, 1, 1], [], []>} : vector<8x128xf32>, vector<128x128xf32>, vector<8x128xf32> -> vector<8x128xf32>
      %c0_28 = arith.constant 0 : index
      %c0_29 = arith.constant 0 : index
      %42 = vector.load %arg5[%c0_28, %c0_29] : memref<1x128xf32, #tpu.memory_space<vmem>>, vector<1x128xf32>
      %43 = vector.broadcast %42 : vector<1x128xf32> to vector<8x128xf32>
      %44 = arith.addf %41, %43 : vector<8x128xf32>
      %c0_30 = arith.constant 0 : index
      %c0_31 = arith.constant 0 : index
      %45 = vector.load %arg6[%c0_30, %c0_31] : memref<8x128xf32, #tpu.memory_space<vmem>>, vector<8x128xf32>
      tpu.vector_store %arg6[%c0_30, %c0_31], %44 {strides = array<i32>} : memref<8x128xf32, #tpu.memory_space<vmem>>, vector<8x128xf32>,
    } else {
    }
    return
  }
  func.func @transform_0(%arg0: i32, %arg1: i32) -> (i32, i32, i32, i32) {
    %c0_i32 = arith.constant 0 : i32
    %c0_i32_0 = arith.constant 0 : i32
    %c0_i32_1 = arith.constant 0 : i32
    return %c0_i32, %arg0, %arg1, %c0_i32_0 : i32, i32, i32, i32
  }
  func.func @transform_1(%arg0: i32, %arg1: i32) -> (i32, i32, i32) {
    %c0_i32 = arith.constant 0 : i32
    %c0_i32_0 = arith.constant 0 : i32
    return %c0_i32, %arg0, %arg1 : i32, i32, i32
  }
  func.func @transform_2(%arg0: i32, %arg1: i32) -> (i32, i32) {
    %c0_i32 = arith.constant 0 : i32
    %c0_i32_0 = arith.constant 0 : i32
    %c0_i32_1 = arith.constant 0 : i32
    return %c0_i32, %c0_i32_0 : i32, i32
  }
  func.func @transform_3(%arg0: i32, %arg1: i32) -> (i32, i32) {
    %c0_i32 = arith.constant 0 : i32
    %c0_i32_0 = arith.constant 0 : i32
    %c0_i32_1 = arith.constant 0 : i32
    return %c0_i32, %c0_i32_0 : i32, i32
  }
  func.func @transform_4(%arg0: i32, %arg1: i32) -> (i32, i32) {
    %c0_i32 = arith.constant 0 : i32
    %c0_i32_0 = arith.constant 0 : i32
    return %arg0, %c0_i32 : i32, i32
  }
}

</mosaic_0001>

<llo_original>
// kernel: tpu_custom_call.1
$region0: #{tpu_custom_call.1}
  #allocation0 [shape = 'u32[]', space=smem, size = 0x4, offset = 0x4, fixed_abs, tag = 'smem constant byte address 0x4 - core index']
  #allocation1 [shape = 'u32[144,128]{1,0:T(1,128)}', space=vmem, size = 0x12000, scoped, tag = 'internal scratch']
  #allocation2 [shape = 'f32[16,128]{1,0:T(8,128)}', space=vmem, size = 0x2000, scoped, tag = 'scratch operand']
  #allocation3 [shape = 'f32[16,1]{1,0:T(8,128)}', space=vmem, size = 0x2000, scoped, tag = 'scratch operand']
  %s0 = inlined_call_operand.hbm [shape: bf16[2,8,8,128], index: 0, kind: input, shape index: {}]
  %s1 = inlined_call_operand.hbm [shape: f32[2,8,8], index: 1, kind: input, shape index: {}]
  %s2 = inlined_call_operand.hbm [shape: f32[128,128], index: 2, kind: input, shape index: {}]
  %s3 = inlined_call_operand.vmem [shape: f32[1,128], index: 3, kind: input, shape index: {}]
  %s4 = inlined_call_operand.hbm [shape: f32[8,128], index: 4, kind: output, shape index: {}]
  %s5 = sld [smem:[#allocation0]]
  $region46: #{tpu_custom_call.1} parent=0
    _
  %s7 = ssub.s32 1, %s5
  %s8 = scalar_select 0, %s7, %s5
  $region1: #{tpu_custom_call.1} parent=0
    #allocation4 [shape = 'u8[32768]{0}', space=vmem, size = 0x8000, scoped, tag = 'input window, operand 0, single buffered']
    #allocation5 [shape = 's32[1]{0}', space=sflag, size = 0x4, scoped, tag = 'scoped memory for tpu_custom_call.1']
    #allocation6 [shape = 's32[1]{0}', space=sflag, size = 0x4, scoped, tag = 'scoped memory for tpu_custom_call.1']
    #allocation7 [shape = 'u8[8192]{0}', space=vmem, size = 0x2000, scoped, tag = 'input window, operand 1, single buffered']
    #allocation8 [shape = 's32[1]{0}', space=sflag, size = 0x4, scoped, tag = 'scoped memory for tpu_custom_call.1']
    #allocation9 [shape = 'u8[65536]{0}', space=vmem, size = 0x10000, scoped, tag = 'input window, operand 2, single buffered']
    #allocation10 [shape = 'u8[4096]{0}', space=vmem, size = 0x1000, scoped, tag = 'output window, operand 0, single buffered']
    %9 = vsyncpa [#allocation5], 0
    %10 = vsyncpa [#allocation8], 0
    %11 = vsyncpa [#allocation6], 0
    // Predicated region
    $region2: #{tpu_custom_call.1} parent=1 // pred_check
      _
    $region3: #{tpu_custom_call.1} parent=1 // pred_check_branch
      %13 = sbr.rel (0) target = $region5
    $region4: #{tpu_custom_call.1} parent=1 // pred_region
      %s15 = ssub.s32 1024, 1024
      %16 = vsyncadd [#allocation5], %s15
      %s17 = sshll.u32 [#allocation4], 4
      %s18 = int_to_ptr.vmem [resolvable:$true] %s17
      %23 = dma.hbm_to_vmem [thread:$0]  %s0, 1024, %s18, [#allocation5], 64, 64, 4
    $region5: #{tpu_custom_call.1} parent=1 // pred_fallthru
      _
    // Predicated region
    $region6: #{tpu_custom_call.1} parent=1 // pred_check
      _
    $region7: #{tpu_custom_call.1} parent=1 // pred_check_branch
      %25 = sbr.rel (0) target = $region9
    $region8: #{tpu_custom_call.1} parent=1 // pred_region
      %s27 = ssub.s32 256, 256
      %28 = vsyncadd [#allocation8], %s27
      %s29 = sshll.u32 [#allocation7], 4
      %s30 = int_to_ptr.vmem [resolvable:$true] %s29
      %35 = dma.hbm_to_vmem [thread:$0]  %s1, 256, %s30, [#allocation8], 128, 128, 8
    $region9: #{tpu_custom_call.1} parent=1 // pred_fallthru
      _
    // Predicated region
    $region10: #{tpu_custom_call.1} parent=1 // pred_check
      _
    $region11: #{tpu_custom_call.1} parent=1 // pred_check_branch
      %37 = sbr.rel (0) target = $region13
    $region12: #{tpu_custom_call.1} parent=1 // pred_region
      %s39 = ssub.s32 2048, 2048
      %40 = vsyncadd [#allocation8], %s39
      %s41 = sshll.u32 [#allocation9], 4
      %s42 = int_to_ptr.vmem [resolvable:$true] %s41
      %47 = dma.hbm_to_vmem [thread:$0]  %s2, 2048, %s42, [#allocation8], 128, 128, 8
    $region13: #{tpu_custom_call.1} parent=1 // pred_fallthru
      _
    // Predicated region
    $region14: #{tpu_custom_call.1} parent=1 // pred_check
      _
    $region15: #{tpu_custom_call.1} parent=1 // pred_check_branch
      %49 = sbr.rel (0) target = $region17
    $region16: #{tpu_custom_call.1} parent=1 // pred_region
      _
    $region17: #{tpu_custom_call.1} parent=1 // pred_fallthru
      _
    // Predicated region
    $region18: #{tpu_custom_call.1} parent=1 // pred_check
      _
    $region19: #{tpu_custom_call.1} parent=1 // pred_check_branch
      %51 = sbr.rel (0) target = $region21
    $region20: #{tpu_custom_call.1} parent=1 // pred_region
      %52 = dma.done [#allocation5], 1024
    $region21: #{tpu_custom_call.1} parent=1 // pred_fallthru
      _
    // Predicated region
    $region22: #{tpu_custom_call.1} parent=1 // pred_check
      _
    $region23: #{tpu_custom_call.1} parent=1 // pred_check_branch
      %54 = sbr.rel (0) target = $region25
    $region24: #{tpu_custom_call.1} parent=1 // pred_region
      %55 = dma.done [#allocation8], 256
    $region25: #{tpu_custom_call.1} parent=1 // pred_fallthru
      _
    // Predicated region
    $region26: #{tpu_custom_call.1} parent=1 // pred_check
      _
    $region27: #{tpu_custom_call.1} parent=1 // pred_check_branch
      %57 = sbr.rel (0) target = $region29
    $region28: #{tpu_custom_call.1} parent=1 // pred_region
      %58 = dma.done [#allocation8], 2048
    $region29: #{tpu_custom_call.1} parent=1 // pred_fallthru
      _
    %p60 = scmp.eq.s32.totalorder 0, 0
    // Predicated region
    $region30: #{tpu_custom_call.1} parent=1 // pred_check
      %p61 = pneg %p60
    $region31: #{tpu_custom_call.1} parent=1 // pred_check_branch
      %63 = sbr.rel (%p61) target = $region33
    $region32: #{tpu_custom_call.1} parent=1 // pred_region
      %64 = vst [vmem:[#allocation2] sm:$0xff] 0.0
      %65 = vst [vmem:[#allocation2 + $0x8] sm:$0xff] 0.0
      %vm66 = vcmask 7168
      %67 = vst.msk [vmem:[#allocation3] sm:$0xff] %vm66, 0.0
      %68 = vst.msk [vmem:[#allocation3 + $0x8] sm:$0xff] %vm66, 0.0
    $region33: #{tpu_custom_call.1} parent=1 // pred_fallthru
      _
    %v69 = vld [vmem:[#allocation4] sm:$0xf]
    %v70 = vld [vmem:[#allocation4 + $0x4] sm:$0xf]
    %v71 = vld [vmem:[#allocation4 + $0x8] sm:$0xf]
    %v72 = vld [vmem:[#allocation4 + $0xc] sm:$0xf]
    %v73 = vld [vmem:[#allocation4 + $0x10] sm:$0xf]
    %v74 = vld [vmem:[#allocation4 + $0x14] sm:$0xf]
    %v75 = vld [vmem:[#allocation4 + $0x18] sm:$0xf]
    %v76 = vld [vmem:[#allocation4 + $0x1c] sm:$0xf]
    %v77 = vld [vmem:[#allocation4 + $0x20] sm:$0xf]
    %v78 = vld [vmem:[#allocation4 + $0x24] sm:$0xf]
    %v79 = vld [vmem:[#allocation4 + $0x28] sm:$0xf]
    %v80 = vld [vmem:[#allocation4 + $0x2c] sm:$0xf]
    %v81 = vld [vmem:[#allocation4 + $0x30] sm:$0xf]
    %v82 = vld [vmem:[#allocation4 + $0x34] sm:$0xf]
    %v83 = vld [vmem:[#allocation4 + $0x38] sm:$0xf]
    %v84 = vld [vmem:[#allocation4 + $0x3c] sm:$0xf]
    %v85 = vld [vmem:[#allocation7] sm:$0xff]
    %v86 = vld [vmem:[#allocation7 + $0x8] sm:$0xff]
    %v89 = vcombine.high %v85, %v85
    %v91 = vunpack.c.l.s4 1966171168
    %v92 = vunpack.c.0.s8 %v91
    %v93 = vlaneseq
    %v94 = vshrl.u32 %v93, 7
    %v95 = vsub.s32 %v92, %v94
    %v96 = vrot.slane %v85, %v95
    %v98 = vunpack.c.l.s4 1966171168
    %v99 = vunpack.c.0.s8 %v98
    %v100 = vlaneseq
    %v101 = vshrl.u32 %v100, 7
    %v102 = vsub.s32 %v99, %v101
    %v103 = vrot.slane %v89, %v102
    %v104 = vcombine.high %v96, %v96
    %v105 = vcombine.high %v103, %v103
    %v107 = vunpack.c.l.s4 1966171168
    %v108 = vunpack.c.0.s8 %v107
    %v109 = vlaneseq
    %v110 = vshrl.u32 %v109, 7
    %v111 = vsub.s32 %v108, %v110
    %v112 = vrot.slane %v96, %v111
    %v114 = vunpack.c.l.s4 1966171168
    %v115 = vunpack.c.0.s8 %v114
    %v116 = vlaneseq
    %v117 = vshrl.u32 %v116, 7
    %v118 = vsub.s32 %v115, %v117
    %v119 = vrot.slane %v103, %v118
    %v121 = vunpack.c.l.s4 1966171168
    %v122 = vunpack.c.0.s8 %v121
    %v123 = vlaneseq
    %v124 = vshrl.u32 %v123, 7
    %v125 = vsub.s32 %v122, %v124
    %v126 = vrot.slane %v104, %v125
    %v128 = vunpack.c.l.s4 1966171168
    %v129 = vunpack.c.0.s8 %v128
    %v130 = vlaneseq
    %v131 = vshrl.u32 %v130, 7
    %v132 = vsub.s32 %v129, %v131
    %v133 = vrot.slane %v105, %v132
    %v134 = vcombine.high %v112, %v112
    %v135 = vcombine.high %v119, %v119
    %v136 = vcombine.high %v126, %v126
    %v137 = vcombine.high %v133, %v133
    %v138 = vcombine.high %v86, %v86
    %v140 = vunpack.c.l.s4 1966171168
    %v141 = vunpack.c.0.s8 %v140
    %v142 = vlaneseq
    %v143 = vshrl.u32 %v142, 7
    %v144 = vsub.s32 %v141, %v143
    %v145 = vrot.slane %v86, %v144
    %v147 = vunpack.c.l.s4 1966171168
    %v148 = vunpack.c.0.s8 %v147
    %v149 = vlaneseq
    %v150 = vshrl.u32 %v149, 7
    %v151 = vsub.s32 %v148, %v150
    %v152 = vrot.slane %v138, %v151
    %v153 = vcombine.high %v145, %v145
    %v154 = vcombine.high %v152, %v152
    %v156 = vunpack.c.l.s4 1966171168
    %v157 = vunpack.c.0.s8 %v156
    %v158 = vlaneseq
    %v159 = vshrl.u32 %v158, 7
    %v160 = vsub.s32 %v157, %v159
    %v161 = vrot.slane %v145, %v160
    %v163 = vunpack.c.l.s4 1966171168
    %v164 = vunpack.c.0.s8 %v163
    %v165 = vlaneseq
    %v166 = vshrl.u32 %v165, 7
    %v167 = vsub.s32 %v164, %v166
    %v168 = vrot.slane %v152, %v167
    %v170 = vunpack.c.l.s4 1966171168
    %v171 = vunpack.c.0.s8 %v170
    %v172 = vlaneseq
    %v173 = vshrl.u32 %v172, 7
    %v174 = vsub.s32 %v171, %v173
    %v175 = vrot.slane %v153, %v174
    %v177 = vunpack.c.l.s4 1966171168
    %v178 = vunpack.c.0.s8 %v177
    %v179 = vlaneseq
    %v180 = vshrl.u32 %v179, 7
    %v181 = vsub.s32 %v178, %v180
    %v182 = vrot.slane %v154, %v181
    %v183 = vcombine.high %v161, %v161
    %v184 = vcombine.high %v168, %v168
    %v185 = vcombine.high %v175, %v175
    %v186 = vcombine.high %v182, %v182
    %v203 = vpack.c.bf16 %v112, %v112
    %v204 = vpack.c.bf16 %v126, %v126
    %v205 = vpack.c.bf16 %v134, %v134
    %v206 = vpack.c.bf16 %v136, %v136
    %v207 = vpack.c.bf16 %v119, %v119
    %v208 = vpack.c.bf16 %v133, %v133
    %v209 = vpack.c.bf16 %v135, %v135
    %v210 = vpack.c.bf16 %v137, %v137
    %v211 = vpack.c.bf16 %v161, %v161
    %v212 = vpack.c.bf16 %v175, %v175
    %v213 = vpack.c.bf16 %v183, %v183
    %v214 = vpack.c.bf16 %v185, %v185
    %v215 = vpack.c.bf16 %v168, %v168
    %v216 = vpack.c.bf16 %v182, %v182
    %v217 = vpack.c.bf16 %v184, %v184
    %v218 = vpack.c.bf16 %v186, %v186
    %vm219 = vcmask 64512
    %v221 = vsel %vm219, %v203, 0
    %vm223 = vcmask 1043456
    %v225 = vsel %vm223, %v69, 0
    %227 = vmatprep.subr.bf16.mxu0 0
    %228 = vmatpush1.bf16.msra.mxu0 0
    %229 = vmatprep.subr.bf16.mxu0 0
    %230 = vmatpush1.bf16.msra.mxu0 0
    %231 = vmatprep.subr.bf16.mxu0 0
    %232 = vmatpush1.bf16.msra.mxu0 0
    %233 = vmatprep.subr.bf16.mxu0 0
    %234 = vmatpush1.bf16.msra.mxu0 0
    %235 = vmatprep.subr.bf16.mxu0 0
    %236 = vmatpush1.bf16.msra.mxu0 0
    %237 = vmatprep.subr.bf16.mxu0 0
    %238 = vmatpush1.bf16.msra.mxu0 0
    %239 = vmatprep.subr.bf16.mxu0 0
    %240 = vmatpush1.bf16.msra.mxu0 0
    %241 = vmatprep.subr.bf16.mxu0 0
    %242 = vmatpush1.bf16.msra.mxu0 %v225
    %243 = vmatprep.subr.bf16.mxu0 0
    %244 = vmatpush2.bf16.msra.mxu0 0
    %245 = vmatprep.subr.bf16.mxu0 0
    %246 = vmatpush2.bf16.msra.mxu0 0
    %247 = vmatprep.subr.bf16.mxu0 0
    %248 = vmatpush2.bf16.msra.mxu0 0
    %249 = vmatprep.subr.bf16.mxu0 0
    %250 = vmatpush2.bf16.msra.mxu0 0
    %251 = vmatprep.subr.bf16.mxu0 0
    %252 = vmatpush2.bf16.msra.mxu0 0
    %253 = vmatprep.subr.bf16.mxu0 0
    %254 = vmatpush2.bf16.msra.mxu0 0
    %255 = vmatprep.subr.bf16.mxu0 0
    %256 = vmatpush2.bf16.msra.mxu0 0
    %257 = vmatprep.subr.bf16.mxu0 0
    %258 = vmatpush2.bf16.msra.mxu0 0
    %259 = vmatprep.mubr.bf16.mxu0 0
    %260 = vmatmul.mubr.bf16.gmra.mxu0 %v221
    %v261 = vpop.f32.mrf.mxu0
    %v262 = vadd.f32 0.0, %v261
    %v263 = vpop.f32.mrf.mxu0
    %v264 = vpop.f32.mrf.mxu0
    %v265 = vpop.f32.mrf.mxu0
    %266 = vdwg.mxu0
    %v268 = vsel %vm219, %v204, 0
    %v271 = vsel %vm223, %v70, 0
    %273 = vmatprep.subr.bf16.mxu0 0
    %274 = vmatpush1.bf16.msra.mxu0 0
    %275 = vmatprep.subr.bf16.mxu0 0
    %276 = vmatpush1.bf16.msra.mxu0 0
    %277 = vmatprep.subr.bf16.mxu0 0
    %278 = vmatpush1.bf16.msra.mxu0 0
    %279 = vmatprep.subr.bf16.mxu0 0
    %280 = vmatpush1.bf16.msra.mxu0 0
    %281 = vmatprep.subr.bf16.mxu0 0
    %282 = vmatpush1.bf16.msra.mxu0 0
    %283 = vmatprep.subr.bf16.mxu0 0
    %284 = vmatpush1.bf16.msra.mxu0 0
    %285 = vmatprep.subr.bf16.mxu0 0
    %286 = vmatpush1.bf16.msra.mxu0 0
    %287 = vmatprep.subr.bf16.mxu0 0
    %288 = vmatpush1.bf16.msra.mxu0 %v271
    %289 = vmatprep.subr.bf16.mxu0 0
    %290 = vmatpush2.bf16.msra.mxu0 0
    %291 = vmatprep.subr.bf16.mxu0 0
    %292 = vmatpush2.bf16.msra.mxu0 0
    %293 = vmatprep.subr.bf16.mxu0 0
    %294 = vmatpush2.bf16.msra.mxu0 0
    %295 = vmatprep.subr.bf16.mxu0 0
    %296 = vmatpush2.bf16.msra.mxu0 0
    %297 = vmatprep.subr.bf16.mxu0 0
    %298 = vmatpush2.bf16.msra.mxu0 0
    %299 = vmatprep.subr.bf16.mxu0 0
    %300 = vmatpush2.bf16.msra.mxu0 0
    %301 = vmatprep.subr.bf16.mxu0 0
    %302 = vmatpush2.bf16.msra.mxu0 0
    %303 = vmatprep.subr.bf16.mxu0 0
    %304 = vmatpush2.bf16.msra.mxu0 0
    %305 = vmatprep.mubr.bf16.mxu0 0
    %306 = vmatmul.mubr.bf16.gmra.mxu0 %v268
    %v307 = vpop.f32.mrf.mxu0
    %v308 = vadd.f32 0.0, %v307
    %v309 = vpop.f32.mrf.mxu0
    %v310 = vpop.f32.mrf.mxu0
    %v311 = vpop.f32.mrf.mxu0
    %312 = vdwg.mxu0
    %v314 = vsel %vm219, %v205, 0
    %v317 = vsel %vm223, %v71, 0
    %319 = vmatprep.subr.bf16.mxu0 0
    %320 = vmatpush1.bf16.msra.mxu0 0
    %321 = vmatprep.subr.bf16.mxu0 0
    %322 = vmatpush1.bf16.msra.mxu0 0
    %323 = vmatprep.subr.bf16.mxu0 0
    %324 = vmatpush1.bf16.msra.mxu0 0
    %325 = vmatprep.subr.bf16.mxu0 0
    %326 = vmatpush1.bf16.msra.mxu0 0
    %327 = vmatprep.subr.bf16.mxu0 0
    %328 = vmatpush1.bf16.msra.mxu0 0
    %329 = vmatprep.subr.bf16.mxu0 0
    %330 = vmatpush1.bf16.msra.mxu0 0
    %331 = vmatprep.subr.bf16.mxu0 0
    %332 = vmatpush1.bf16.msra.mxu0 0
    %333 = vmatprep.subr.bf16.mxu0 0
    %334 = vmatpush1.bf16.msra.mxu0 %v317
    %335 = vmatprep.subr.bf16.mxu0 0
    %336 = vmatpush2.bf16.msra.mxu0 0
    %337 = vmatprep.subr.bf16.mxu0 0
    %338 = vmatpush2.bf16.msra.mxu0 0
    %339 = vmatprep.subr.bf16.mxu0 0
    %340 = vmatpush2.bf16.msra.mxu0 0
    %341 = vmatprep.subr.bf16.mxu0 0
    %342 = vmatpush2.bf16.msra.mxu0 0
    %343 = vmatprep.subr.bf16.mxu0 0
    %344 = vmatpush2.bf16.msra.mxu0 0
    %345 = vmatprep.subr.bf16.mxu0 0
    %346 = vmatpush2.bf16.msra.mxu0 0
    %347 = vmatprep.subr.bf16.mxu0 0
    %348 = vmatpush2.bf16.msra.mxu0 0
    %349 = vmatprep.subr.bf16.mxu0 0
    %350 = vmatpush2.bf16.msra.mxu0 0
    %351 = vmatprep.mubr.bf16.mxu0 0
    %352 = vmatmul.mubr.bf16.gmra.mxu0 %v314
    %v353 = vpop.f32.mrf.mxu0
    %v354 = vadd.f32 0.0, %v353
    %v355 = vpop.f32.mrf.mxu0
    %v356 = vpop.f32.mrf.mxu0
    %v357 = vpop.f32.mrf.mxu0
    %358 = vdwg.mxu0
    %v360 = vsel %vm219, %v206, 0
    %v363 = vsel %vm223, %v72, 0
    %365 = vmatprep.subr.bf16.mxu0 0
    %366 = vmatpush1.bf16.msra.mxu0 0
    %367 = vmatprep.subr.bf16.mxu0 0
    %368 = vmatpush1.bf16.msra.mxu0 0
    %369 = vmatprep.subr.bf16.mxu0 0
    %370 = vmatpush1.bf16.msra.mxu0 0
    %371 = vmatprep.subr.bf16.mxu0 0
    %372 = vmatpush1.bf16.msra.mxu0 0
    %373 = vmatprep.subr.bf16.mxu0 0
    %374 = vmatpush1.bf16.msra.mxu0 0
    %375 = vmatprep.subr.bf16.mxu0 0
    %376 = vmatpush1.bf16.msra.mxu0 0
    %377 = vmatprep.subr.bf16.mxu0 0
    %378 = vmatpush1.bf16.msra.mxu0 0
    %379 = vmatprep.subr.bf16.mxu0 0
    %380 = vmatpush1.bf16.msra.mxu0 %v363
    %381 = vmatprep.subr.bf16.mxu0 0
    %382 = vmatpush2.bf16.msra.mxu0 0
    %383 = vmatprep.subr.bf16.mxu0 0
    %384 = vmatpush2.bf16.msra.mxu0 0
    %385 = vmatprep.subr.bf16.mxu0 0
    %386 = vmatpush2.bf16.msra.mxu0 0
    %387 = vmatprep.subr.bf16.mxu0 0
    %388 = vmatpush2.bf16.msra.mxu0 0
    %389 = vmatprep.subr.bf16.mxu0 0
    %390 = vmatpush2.bf16.msra.mxu0 0
    %391 = vmatprep.subr.bf16.mxu0 0
    %392 = vmatpush2.bf16.msra.mxu0 0
    %393 = vmatprep.subr.bf16.mxu0 0
    %394 = vmatpush2.bf16.msra.mxu0 0
    %395 = vmatprep.subr.bf16.mxu0 0
    %396 = vmatpush2.bf16.msra.mxu0 0
    %397 = vmatprep.mubr.bf16.mxu0 0
    %398 = vmatmul.mubr.bf16.gmra.mxu0 %v360
    %v399 = vpop.f32.mrf.mxu0
    %v400 = vadd.f32 0.0, %v399
    %v401 = vpop.f32.mrf.mxu0
    %v402 = vpop.f32.mrf.mxu0
    %v403 = vpop.f32.mrf.mxu0
    %404 = vdwg.mxu0
    %v406 = vsel %vm219, %v207, 0
    %v409 = vsel %vm223, %v73, 0
    %411 = vmatprep.subr.bf16.mxu0 0
    %412 = vmatpush1.bf16.msra.mxu0 0
    %413 = vmatprep.subr.bf16.mxu0 0
    %414 = vmatpush1.bf16.msra.mxu0 0
    %415 = vmatprep.subr.bf16.mxu0 0
    %416 = vmatpush1.bf16.msra.mxu0 0
    %417 = vmatprep.subr.bf16.mxu0 0
    %418 = vmatpush1.bf16.msra.mxu0 0
    %419 = vmatprep.subr.bf16.mxu0 0
    %420 = vmatpush1.bf16.msra.mxu0 0
    %421 = vmatprep.subr.bf16.mxu0 0
    %422 = vmatpush1.bf16.msra.mxu0 0
    %423 = vmatprep.subr.bf16.mxu0 0
    %424 = vmatpush1.bf16.msra.mxu0 0
    %425 = vmatprep.subr.bf16.mxu0 0
    %426 = vmatpush1.bf16.msra.mxu0 %v409
    %427 = vmatprep.subr.bf16.mxu0 0
    %428 = vmatpush2.bf16.msra.mxu0 0
    %429 = vmatprep.subr.bf16.mxu0 0
    %430 = vmatpush2.bf16.msra.mxu0 0
    %431 = vmatprep.subr.bf16.mxu0 0
    %432 = vmatpush2.bf16.msra.mxu0 0
    %433 = vmatprep.subr.bf16.mxu0 0
    %434 = vmatpush2.bf16.msra.mxu0 0
    %435 = vmatprep.subr.bf16.mxu0 0
    %436 = vmatpush2.bf16.msra.mxu0 0
    %437 = vmatprep.subr.bf16.mxu0 0
    %438 = vmatpush2.bf16.msra.mxu0 0
    %439 = vmatprep.subr.bf16.mxu0 0
    %440 = vmatpush2.bf16.msra.mxu0 0
    %441 = vmatprep.subr.bf16.mxu0 0
    %442 = vmatpush2.bf16.msra.mxu0 0
    %443 = vmatprep.mubr.bf16.mxu0 0
    %444 = vmatmul.mubr.bf16.gmra.mxu0 %v406
    %v445 = vpop.f32.mrf.mxu0
    %v446 = vadd.f32 0.0, %v445
    %v447 = vpop.f32.mrf.mxu0
    %v448 = vpop.f32.mrf.mxu0
    %v449 = vpop.f32.mrf.mxu0
    %450 = vdwg.mxu0
    %v452 = vsel %vm219, %v208, 0
    %v455 = vsel %vm223, %v74, 0
    %457 = vmatprep.subr.bf16.mxu0 0
    %458 = vmatpush1.bf16.msra.mxu0 0
    %459 = vmatprep.subr.bf16.mxu0 0
    %460 = vmatpush1.bf16.msra.mxu0 0
    %461 = vmatprep.subr.bf16.mxu0 0
    %462 = vmatpush1.bf16.msra.mxu0 0
    %463 = vmatprep.subr.bf16.mxu0 0
    %464 = vmatpush1.bf16.msra.mxu0 0
    %465 = vmatprep.subr.bf16.mxu0 0
    %466 = vmatpush1.bf16.msra.mxu0 0
    %467 = vmatprep.subr.bf16.mxu0 0
    %468 = vmatpush1.bf16.msra.mxu0 0
    %469 = vmatprep.subr.bf16.mxu0 0
    %470 = vmatpush1.bf16.msra.mxu0 0
    %471 = vmatprep.subr.bf16.mxu0 0
    %472 = vmatpush1.bf16.msra.mxu0 %v455
    %473 = vmatprep.subr.bf16.mxu0 0
    %474 = vmatpush2.bf16.msra.mxu0 0
    %475 = vmatprep.subr.bf16.mxu0 0
    %476 = vmatpush2.bf16.msra.mxu0 0
    %477 = vmatprep.subr.bf16.mxu0 0
    %478 = vmatpush2.bf16.msra.mxu0 0
    %479 = vmatprep.subr.bf16.mxu0 0
    %480 = vmatpush2.bf16.msra.mxu0 0
    %481 = vmatprep.subr.bf16.mxu0 0
    %482 = vmatpush2.bf16.msra.mxu0 0
    %483 = vmatprep.subr.bf16.mxu0 0
    %484 = vmatpush2.bf16.msra.mxu0 0
    %485 = vmatprep.subr.bf16.mxu0 0
    %486 = vmatpush2.bf16.msra.mxu0 0
    %487 = vmatprep.subr.bf16.mxu0 0
    %488 = vmatpush2.bf16.msra.mxu0 0
    %489 = vmatprep.mubr.bf16.mxu0 0
    %490 = vmatmul.mubr.bf16.gmra.mxu0 %v452
    %v491 = vpop.f32.mrf.mxu0
    %v492 = vadd.f32 0.0, %v491
    %v493 = vpop.f32.mrf.mxu0
    %v494 = vpop.f32.mrf.mxu0
    %v495 = vpop.f32.mrf.mxu0
    %496 = vdwg.mxu0
    %v498 = vsel %vm219, %v209, 0
    %v501 = vsel %vm223, %v75, 0
    %503 = vmatprep.subr.bf16.mxu0 0
    %504 = vmatpush1.bf16.msra.mxu0 0
    %505 = vmatprep.subr.bf16.mxu0 0
    %506 = vmatpush1.bf16.msra.mxu0 0
    %507 = vmatprep.subr.bf16.mxu0 0
    %508 = vmatpush1.bf16.msra.mxu0 0
    %509 = vmatprep.subr.bf16.mxu0 0
    %510 = vmatpush1.bf16.msra.mxu0 0
    %511 = vmatprep.subr.bf16.mxu0 0
    %512 = vmatpush1.bf16.msra.mxu0 0
    %513 = vmatprep.subr.bf16.mxu0 0
    %514 = vmatpush1.bf16.msra.mxu0 0
    %515 = vmatprep.subr.bf16.mxu0 0
    %516 = vmatpush1.bf16.msra.mxu0 0
    %517 = vmatprep.subr.bf16.mxu0 0
    %518 = vmatpush1.bf16.msra.mxu0 %v501
    %519 = vmatprep.subr.bf16.mxu0 0
    %520 = vmatpush2.bf16.msra.mxu0 0
    %521 = vmatprep.subr.bf16.mxu0 0
    %522 = vmatpush2.bf16.msra.mxu0 0
    %523 = vmatprep.subr.bf16.mxu0 0
    %524 = vmatpush2.bf16.msra.mxu0 0
    %525 = vmatprep.subr.bf16.mxu0 0
    %526 = vmatpush2.bf16.msra.mxu0 0
    %527 = vmatprep.subr.bf16.mxu0 0
    %528 = vmatpush2.bf16.msra.mxu0 0
    %529 = vmatprep.subr.bf16.mxu0 0
    %530 = vmatpush2.bf16.msra.mxu0 0
    %531 = vmatprep.subr.bf16.mxu0 0
    %532 = vmatpush2.bf16.msra.mxu0 0
    %533 = vmatprep.subr.bf16.mxu0 0
    %534 = vmatpush2.bf16.msra.mxu0 0
    %535 = vmatprep.mubr.bf16.mxu0 0
    %536 = vmatmul.mubr.bf16.gmra.mxu0 %v498
    %v537 = vpop.f32.mrf.mxu0
    %v538 = vadd.f32 0.0, %v537
    %v539 = vpop.f32.mrf.mxu0
    %v540 = vpop.f32.mrf.mxu0
    %v541 = vpop.f32.mrf.mxu0
    %542 = vdwg.mxu0
    %v544 = vsel %vm219, %v210, 0
    %v547 = vsel %vm223, %v76, 0
    %549 = vmatprep.subr.bf16.mxu0 0
    %550 = vmatpush1.bf16.msra.mxu0 0
    %551 = vmatprep.subr.bf16.mxu0 0
    %552 = vmatpush1.bf16.msra.mxu0 0
    %553 = vmatprep.subr.bf16.mxu0 0
    %554 = vmatpush1.bf16.msra.mxu0 0
    %555 = vmatprep.subr.bf16.mxu0 0
    %556 = vmatpush1.bf16.msra.mxu0 0
    %557 = vmatprep.subr.bf16.mxu0 0
    %558 = vmatpush1.bf16.msra.mxu0 0
    %559 = vmatprep.subr.bf16.mxu0 0
    %560 = vmatpush1.bf16.msra.mxu0 0
    %561 = vmatprep.subr.bf16.mxu0 0
    %562 = vmatpush1.bf16.msra.mxu0 0
    %563 = vmatprep.subr.bf16.mxu0 0
    %564 = vmatpush1.bf16.msra.mxu0 %v547
    %565 = vmatprep.subr.bf16.mxu0 0
    %566 = vmatpush2.bf16.msra.mxu0 0
    %567 = vmatprep.subr.bf16.mxu0 0
    %568 = vmatpush2.bf16.msra.mxu0 0
    %569 = vmatprep.subr.bf16.mxu0 0
    %570 = vmatpush2.bf16.msra.mxu0 0
    %571 = vmatprep.subr.bf16.mxu0 0
    %572 = vmatpush2.bf16.msra.mxu0 0
    %573 = vmatprep.subr.bf16.mxu0 0
    %574 = vmatpush2.bf16.msra.mxu0 0
    %575 = vmatprep.subr.bf16.mxu0 0
    %576 = vmatpush2.bf16.msra.mxu0 0
    %577 = vmatprep.subr.bf16.mxu0 0
    %578 = vmatpush2.bf16.msra.mxu0 0
    %579 = vmatprep.subr.bf16.mxu0 0
    %580 = vmatpush2.bf16.msra.mxu0 0
    %581 = vmatprep.mubr.bf16.mxu0 0
    %582 = vmatmul.mubr.bf16.gmra.mxu0 %v544
    %v583 = vpop.f32.mrf.mxu0
    %v584 = vadd.f32 0.0, %v583
    %v585 = vpop.f32.mrf.mxu0
    %v586 = vpop.f32.mrf.mxu0
    %v587 = vpop.f32.mrf.mxu0
    %588 = vdwg.mxu0
    %v590 = vsel %vm219, %v211, 0
    %v593 = vsel %vm223, %v77, 0
    %595 = vmatprep.subr.bf16.mxu0 0
    %596 = vmatpush1.bf16.msra.mxu0 0
    %597 = vmatprep.subr.bf16.mxu0 0
    %598 = vmatpush1.bf16.msra.mxu0 0
    %599 = vmatprep.subr.bf16.mxu0 0
    %600 = vmatpush1.bf16.msra.mxu0 0
    %601 = vmatprep.subr.bf16.mxu0 0
    %602 = vmatpush1.bf16.msra.mxu0 0
    %603 = vmatprep.subr.bf16.mxu0 0
    %604 = vmatpush1.bf16.msra.mxu0 0
    %605 = vmatprep.subr.bf16.mxu0 0
    %606 = vmatpush1.bf16.msra.mxu0 0
    %607 = vmatprep.subr.bf16.mxu0 0
    %608 = vmatpush1.bf16.msra.mxu0 0
    %609 = vmatprep.subr.bf16.mxu0 0
    %610 = vmatpush1.bf16.msra.mxu0 %v593
    %611 = vmatprep.subr.bf16.mxu0 0
    %612 = vmatpush2.bf16.msra.mxu0 0
    %613 = vmatprep.subr.bf16.mxu0 0
    %614 = vmatpush2.bf16.msra.mxu0 0
    %615 = vmatprep.subr.bf16.mxu0 0
    %616 = vmatpush2.bf16.msra.mxu0 0
    %617 = vmatprep.subr.bf16.mxu0 0
    %618 = vmatpush2.bf16.msra.mxu0 0
    %619 = vmatprep.subr.bf16.mxu0 0
    %620 = vmatpush2.bf16.msra.mxu0 0
    %621 = vmatprep.subr.bf16.mxu0 0
    %622 = vmatpush2.bf16.msra.mxu0 0
    %623 = vmatprep.subr.bf16.mxu0 0
    %624 = vmatpush2.bf16.msra.mxu0 0
    %625 = vmatprep.subr.bf16.mxu0 0
    %626 = vmatpush2.bf16.msra.mxu0 0
    %627 = vmatprep.mubr.bf16.mxu0 0
    %628 = vmatmul.mubr.bf16.gmra.mxu0 %v590
    %v629 = vpop.f32.mrf.mxu0
    %v630 = vadd.f32 0.0, %v629
    %v631 = vpop.f32.mrf.mxu0
    %v632 = vpop.f32.mrf.mxu0
    %v633 = vpop.f32.mrf.mxu0
    %634 = vdwg.mxu0
    %v636 = vsel %vm219, %v212, 0
    %v639 = vsel %vm223, %v78, 0
    %641 = vmatprep.subr.bf16.mxu0 0
    %642 = vmatpush1.bf16.msra.mxu0 0
    %643 = vmatprep.subr.bf16.mxu0 0
    %644 = vmatpush1.bf16.msra.mxu0 0
    %645 = vmatprep.subr.bf16.mxu0 0
    %646 = vmatpush1.bf16.msra.mxu0 0
    %647 = vmatprep.subr.bf16.mxu0 0
    %648 = vmatpush1.bf16.msra.mxu0 0
    %649 = vmatprep.subr.bf16.mxu0 0
    %650 = vmatpush1.bf16.msra.mxu0 0
    %651 = vmatprep.subr.bf16.mxu0 0
    %652 = vmatpush1.bf16.msra.mxu0 0
    %653 = vmatprep.subr.bf16.mxu0 0
    %654 = vmatpush1.bf16.msra.mxu0 0
    %655 = vmatprep.subr.bf16.mxu0 0
    %656 = vmatpush1.bf16.msra.mxu0 %v639
    %657 = vmatprep.subr.bf16.mxu0 0
    %658 = vmatpush2.bf16.msra.mxu0 0
    %659 = vmatprep.subr.bf16.mxu0 0
    %660 = vmatpush2.bf16.msra.mxu0 0
    %661 = vmatprep.subr.bf16.mxu0 0
    %662 = vmatpush2.bf16.msra.mxu0 0
    %663 = vmatprep.subr.bf16.mxu0 0
    %664 = vmatpush2.bf16.msra.mxu0 0
    %665 = vmatprep.subr.bf16.mxu0 0
    %666 = vmatpush2.bf16.msra.mxu0 0
    %667 = vmatprep.subr.bf16.mxu0 0
    %668 = vmatpush2.bf16.msra.mxu0 0
    %669 = vmatprep.subr.bf16.mxu0 0
    %670 = vmatpush2.bf16.msra.mxu0 0
    %671 = vmatprep.subr.bf16.mxu0 0
    %672 = vmatpush2.bf16.msra.mxu0 0
    %673 = vmatprep.mubr.bf16.mxu0 0
    %674 = vmatmul.mubr.bf16.gmra.mxu0 %v636
    %v675 = vpop.f32.mrf.mxu0
    %v676 = vadd.f32 0.0, %v675
    %v677 = vpop.f32.mrf.mxu0
    %v678 = vpop.f32.mrf.mxu0
    %v679 = vpop.f32.mrf.mxu0
    %680 = vdwg.mxu0
    %v682 = vsel %vm219, %v213, 0
    %v685 = vsel %vm223, %v79, 0
    %687 = vmatprep.subr.bf16.mxu0 0
    %688 = vmatpush1.bf16.msra.mxu0 0
    %689 = vmatprep.subr.bf16.mxu0 0
    %690 = vmatpush1.bf16.msra.mxu0 0
    %691 = vmatprep.subr.bf16.mxu0 0
    %692 = vmatpush1.bf16.msra.mxu0 0
    %693 = vmatprep.subr.bf16.mxu0 0
    %694 = vmatpush1.bf16.msra.mxu0 0
    %695 = vmatprep.subr.bf16.mxu0 0
    %696 = vmatpush1.bf16.msra.mxu0 0
    %697 = vmatprep.subr.bf16.mxu0 0
    %698 = vmatpush1.bf16.msra.mxu0 0
    %699 = vmatprep.subr.bf16.mxu0 0
    %700 = vmatpush1.bf16.msra.mxu0 0
    %701 = vmatprep.subr.bf16.mxu0 0
    %702 = vmatpush1.bf16.msra.mxu0 %v685
    %703 = vmatprep.subr.bf16.mxu0 0
    %704 = vmatpush2.bf16.msra.mxu0 0
    %705 = vmatprep.subr.bf16.mxu0 0
    %706 = vmatpush2.bf16.msra.mxu0 0
    %707 = vmatprep.subr.bf16.mxu0 0
    %708 = vmatpush2.bf16.msra.mxu0 0
    %709 = vmatprep.subr.bf16.mxu0 0
    %710 = vmatpush2.bf16.msra.mxu0 0
    %711 = vmatprep.subr.bf16.mxu0 0
    %712 = vmatpush2.bf16.msra.mxu0 0
    %713 = vmatprep.subr.bf16.mxu0 0
    %714 = vmatpush2.bf16.msra.mxu0 0
    %715 = vmatprep.subr.bf16.mxu0 0
    %716 = vmatpush2.bf16.msra.mxu0 0
    %717 = vmatprep.subr.bf16.mxu0 0
    %718 = vmatpush2.bf16.msra.mxu0 0
    %719 = vmatprep.mubr.bf16.mxu0 0
    %720 = vmatmul.mubr.bf16.gmra.mxu0 %v682
    %v721 = vpop.f32.mrf.mxu0
    %v722 = vadd.f32 0.0, %v721
    %v723 = vpop.f32.mrf.mxu0
    %v724 = vpop.f32.mrf.mxu0
    %v725 = vpop.f32.mrf.mxu0
    %726 = vdwg.mxu0
    %v728 = vsel %vm219, %v214, 0
    %v731 = vsel %vm223, %v80, 0
    %733 = vmatprep.subr.bf16.mxu0 0
    %734 = vmatpush1.bf16.msra.mxu0 0
    %735 = vmatprep.subr.bf16.mxu0 0
    %736 = vmatpush1.bf16.msra.mxu0 0
    %737 = vmatprep.subr.bf16.mxu0 0
    %738 = vmatpush1.bf16.msra.mxu0 0
    %739 = vmatprep.subr.bf16.mxu0 0
    %740 = vmatpush1.bf16.msra.mxu0 0
    %741 = vmatprep.subr.bf16.mxu0 0
    %742 = vmatpush1.bf16.msra.mxu0 0
    %743 = vmatprep.subr.bf16.mxu0 0
    %744 = vmatpush1.bf16.msra.mxu0 0
    %745 = vmatprep.subr.bf16.mxu0 0
    %746 = vmatpush1.bf16.msra.mxu0 0
    %747 = vmatprep.subr.bf16.mxu0 0
    %748 = vmatpush1.bf16.msra.mxu0 %v731
    %749 = vmatprep.subr.bf16.mxu0 0
    %750 = vmatpush2.bf16.msra.mxu0 0
    %751 = vmatprep.subr.bf16.mxu0 0
    %752 = vmatpush2.bf16.msra.mxu0 0
    %753 = vmatprep.subr.bf16.mxu0 0
    %754 = vmatpush2.bf16.msra.mxu0 0
    %755 = vmatprep.subr.bf16.mxu0 0
    %756 = vmatpush2.bf16.msra.mxu0 0
    %757 = vmatprep.subr.bf16.mxu0 0
    %758 = vmatpush2.bf16.msra.mxu0 0
    %759 = vmatprep.subr.bf16.mxu0 0
    %760 = vmatpush2.bf16.msra.mxu0 0
    %761 = vmatprep.subr.bf16.mxu0 0
    %762 = vmatpush2.bf16.msra.mxu0 0
    %763 = vmatprep.subr.bf16.mxu0 0
    %764 = vmatpush2.bf16.msra.mxu0 0
    %765 = vmatprep.mubr.bf16.mxu0 0
    %766 = vmatmul.mubr.bf16.gmra.mxu0 %v728
    %v767 = vpop.f32.mrf.mxu0
    %v768 = vadd.f32 0.0, %v767
    %v769 = vpop.f32.mrf.mxu0
    %v770 = vpop.f32.mrf.mxu0
    %v771 = vpop.f32.mrf.mxu0
    %772 = vdwg.mxu0
    %v774 = vsel %vm219, %v215, 0
    %v777 = vsel %vm223, %v81, 0
    %779 = vmatprep.subr.bf16.mxu0 0
    %780 = vmatpush1.bf16.msra.mxu0 0
    %781 = vmatprep.subr.bf16.mxu0 0
    %782 = vmatpush1.bf16.msra.mxu0 0
    %783 = vmatprep.subr.bf16.mxu0 0
    %784 = vmatpush1.bf16.msra.mxu0 0
    %785 = vmatprep.subr.bf16.mxu0 0
    %786 = vmatpush1.bf16.msra.mxu0 0
    %787 = vmatprep.subr.bf16.mxu0 0
    %788 = vmatpush1.bf16.msra.mxu0 0
    %789 = vmatprep.subr.bf16.mxu0 0
    %790 = vmatpush1.bf16.msra.mxu0 0
    %791 = vmatprep.subr.bf16.mxu0 0
    %792 = vmatpush1.bf16.msra.mxu0 0
    %793 = vmatprep.subr.bf16.mxu0 0
    %794 = vmatpush1.bf16.msra.mxu0 %v777
    %795 = vmatprep.subr.bf16.mxu0 0
    %796 = vmatpush2.bf16.msra.mxu0 0
    %797 = vmatprep.subr.bf16.mxu0 0
    %798 = vmatpush2.bf16.msra.mxu0 0
    %799 = vmatprep.subr.bf16.mxu0 0
    %800 = vmatpush2.bf16.msra.mxu0 0
    %801 = vmatprep.subr.bf16.mxu0 0
    %802 = vmatpush2.bf16.msra.mxu0 0
    %803 = vmatprep.subr.bf16.mxu0 0
    %804 = vmatpush2.bf16.msra.mxu0 0
    %805 = vmatprep.subr.bf16.mxu0 0
    %806 = vmatpush2.bf16.msra.mxu0 0
    %807 = vmatprep.subr.bf16.mxu0 0
    %808 = vmatpush2.bf16.msra.mxu0 0
    %809 = vmatprep.subr.bf16.mxu0 0
    %810 = vmatpush2.bf16.msra.mxu0 0
    %811 = vmatprep.mubr.bf16.mxu0 0
    %812 = vmatmul.mubr.bf16.gmra.mxu0 %v774
    %v813 = vpop.f32.mrf.mxu0
    %v814 = vadd.f32 0.0, %v813
    %v815 = vpop.f32.mrf.mxu0
    %v816 = vpop.f32.mrf.mxu0
    %v817 = vpop.f32.mrf.mxu0
    %818 = vdwg.mxu0
    %v820 = vsel %vm219, %v216, 0
    %v823 = vsel %vm223, %v82, 0
    %825 = vmatprep.subr.bf16.mxu0 0
    %826 = vmatpush1.bf16.msra.mxu0 0
    %827 = vmatprep.subr.bf16.mxu0 0
    %828 = vmatpush1.bf16.msra.mxu0 0
    %829 = vmatprep.subr.bf16.mxu0 0
    %830 = vmatpush1.bf16.msra.mxu0 0
    %831 = vmatprep.subr.bf16.mxu0 0
    %832 = vmatpush1.bf16.msra.mxu0 0
    %833 = vmatprep.subr.bf16.mxu0 0
    %834 = vmatpush1.bf16.msra.mxu0 0
    %835 = vmatprep.subr.bf16.mxu0 0
    %836 = vmatpush1.bf16.msra.mxu0 0
    %837 = vmatprep.subr.bf16.mxu0 0
    %838 = vmatpush1.bf16.msra.mxu0 0
    %839 = vmatprep.subr.bf16.mxu0 0
    %840 = vmatpush1.bf16.msra.mxu0 %v823
    %841 = vmatprep.subr.bf16.mxu0 0
    %842 = vmatpush2.bf16.msra.mxu0 0
    %843 = vmatprep.subr.bf16.mxu0 0
    %844 = vmatpush2.bf16.msra.mxu0 0
    %845 = vmatprep.subr.bf16.mxu0 0
    %846 = vmatpush2.bf16.msra.mxu0 0
    %847 = vmatprep.subr.bf16.mxu0 0
    %848 = vmatpush2.bf16.msra.mxu0 0
    %849 = vmatprep.subr.bf16.mxu0 0
    %850 = vmatpush2.bf16.msra.mxu0 0
    %851 = vmatprep.subr.bf16.mxu0 0
    %852 = vmatpush2.bf16.msra.mxu0 0
    %853 = vmatprep.subr.bf16.mxu0 0
    %854 = vmatpush2.bf16.msra.mxu0 0
    %855 = vmatprep.subr.bf16.mxu0 0
    %856 = vmatpush2.bf16.msra.mxu0 0
    %857 = vmatprep.mubr.bf16.mxu0 0
    %858 = vmatmul.mubr.bf16.gmra.mxu0 %v820
    %v859 = vpop.f32.mrf.mxu0
    %v860 = vadd.f32 0.0, %v859
    %v861 = vpop.f32.mrf.mxu0
    %v862 = vpop.f32.mrf.mxu0
    %v863 = vpop.f32.mrf.mxu0
    %864 = vdwg.mxu0
    %v866 = vsel %vm219, %v217, 0
    %v869 = vsel %vm223, %v83, 0
    %871 = vmatprep.subr.bf16.mxu0 0
    %872 = vmatpush1.bf16.msra.mxu0 0
    %873 = vmatprep.subr.bf16.mxu0 0
    %874 = vmatpush1.bf16.msra.mxu0 0
    %875 = vmatprep.subr.bf16.mxu0 0
    %876 = vmatpush1.bf16.msra.mxu0 0
    %877 = vmatprep.subr.bf16.mxu0 0
    %878 = vmatpush1.bf16.msra.mxu0 0
    %879 = vmatprep.subr.bf16.mxu0 0
    %880 = vmatpush1.bf16.msra.mxu0 0
    %881 = vmatprep.subr.bf16.mxu0 0
    %882 = vmatpush1.bf16.msra.mxu0 0
    %883 = vmatprep.subr.bf16.mxu0 0
    %884 = vmatpush1.bf16.msra.mxu0 0
    %885 = vmatprep.subr.bf16.mxu0 0
    %886 = vmatpush1.bf16.msra.mxu0 %v869
    %887 = vmatprep.subr.bf16.mxu0 0
    %888 = vmatpush2.bf16.msra.mxu0 0
    %889 = vmatprep.subr.bf16.mxu0 0
    %890 = vmatpush2.bf16.msra.mxu0 0
    %891 = vmatprep.subr.bf16.mxu0 0
    %892 = vmatpush2.bf16.msra.mxu0 0
    %893 = vmatprep.subr.bf16.mxu0 0
    %894 = vmatpush2.bf16.msra.mxu0 0
    %895 = vmatprep.subr.bf16.mxu0 0
    %896 = vmatpush2.bf16.msra.mxu0 0
    %897 = vmatprep.subr.bf16.mxu0 0
    %898 = vmatpush2.bf16.msra.mxu0 0
    %899 = vmatprep.subr.bf16.mxu0 0
    %900 = vmatpush2.bf16.msra.mxu0 0
    %901 = vmatprep.subr.bf16.mxu0 0
    %902 = vmatpush2.bf16.msra.mxu0 0
    %903 = vmatprep.mubr.bf16.mxu0 0
    %904 = vmatmul.mubr.bf16.gmra.mxu0 %v866
    %v905 = vpop.f32.mrf.mxu0
    %v906 = vadd.f32 0.0, %v905
    %v907 = vpop.f32.mrf.mxu0
    %v908 = vpop.f32.mrf.mxu0
    %v909 = vpop.f32.mrf.mxu0
    %910 = vdwg.mxu0
    %v912 = vsel %vm219, %v218, 0
    %v915 = vsel %vm223, %v84, 0
    %917 = vmatprep.subr.bf16.mxu0 0
    %918 = vmatpush1.bf16.msra.mxu0 0
    %919 = vmatprep.subr.bf16.mxu0 0
    %920 = vmatpush1.bf16.msra.mxu0 0
    %921 = vmatprep.subr.bf16.mxu0 0
    %922 = vmatpush1.bf16.msra.mxu0 0
    %923 = vmatprep.subr.bf16.mxu0 0
    %924 = vmatpush1.bf16.msra.mxu0 0
    %925 = vmatprep.subr.bf16.mxu0 0
    %926 = vmatpush1.bf16.msra.mxu0 0
    %927 = vmatprep.subr.bf16.mxu0 0
    %928 = vmatpush1.bf16.msra.mxu0 0
    %929 = vmatprep.subr.bf16.mxu0 0
    %930 = vmatpush1.bf16.msra.mxu0 0
    %931 = vmatprep.subr.bf16.mxu0 0
    %932 = vmatpush1.bf16.msra.mxu0 %v915
    %933 = vmatprep.subr.bf16.mxu0 0
    %934 = vmatpush2.bf16.msra.mxu0 0
    %935 = vmatprep.subr.bf16.mxu0 0
    %936 = vmatpush2.bf16.msra.mxu0 0
    %937 = vmatprep.subr.bf16.mxu0 0
    %938 = vmatpush2.bf16.msra.mxu0 0
    %939 = vmatprep.subr.bf16.mxu0 0
    %940 = vmatpush2.bf16.msra.mxu0 0
    %941 = vmatprep.subr.bf16.mxu0 0
    %942 = vmatpush2.bf16.msra.mxu0 0
    %943 = vmatprep.subr.bf16.mxu0 0
    %944 = vmatpush2.bf16.msra.mxu0 0
    %945 = vmatprep.subr.bf16.mxu0 0
    %946 = vmatpush2.bf16.msra.mxu0 0
    %947 = vmatprep.subr.bf16.mxu0 0
    %948 = vmatpush2.bf16.msra.mxu0 0
    %949 = vmatprep.mubr.bf16.mxu0 0
    %950 = vmatmul.mubr.bf16.gmra.mxu0 %v912
    %v951 = vpop.f32.mrf.mxu0
    %v952 = vadd.f32 0.0, %v951
    %v953 = vpop.f32.mrf.mxu0
    %v954 = vpop.f32.mrf.mxu0
    %v955 = vpop.f32.mrf.mxu0
    %956 = vdwg.mxu0
    %v957 = vld [vmem:[#allocation2] sm:$0xff]
    %v958 = vld [vmem:[#allocation2 + $0x8] sm:$0xff]
    %v975 = vrot.slane %v308, 7
    %vm976 = vcmask 1041409
    %v977 = vsel %vm976, %v975, %v262
    %v978 = vrot.slane %v354, 6
    %vm979 = vcmask 1042434
    %v980 = vsel %vm979, %v978, %v977
    %v981 = vrot.slane %v400, 5
    %vm982 = vcmask 1043459
    %v983 = vsel %vm982, %v981, %v980
    %v984 = vrot.slane %v446, 4
    %vm985 = vcmask 1044484
    %v986 = vsel %vm985, %v984, %v983
    %v987 = vrot.slane %v492, 3
    %vm988 = vcmask 1045509
    %v989 = vsel %vm988, %v987, %v986
    %v990 = vrot.slane %v538, 2
    %vm991 = vcmask 1046534
    %v992 = vsel %vm991, %v990, %v989
    %v993 = vrot.slane %v584, 1
    %vm994 = vcmask 1047559
    %v995 = vsel %vm994, %v993, %v992
    %v996 = vrot.slane %v676, 7
    %v997 = vsel %vm976, %v996, %v630
    %v998 = vrot.slane %v722, 6
    %v999 = vsel %vm979, %v998, %v997
    %v1000 = vrot.slane %v768, 5
    %v1001 = vsel %vm982, %v1000, %v999
    %v1002 = vrot.slane %v814, 4
    %v1003 = vsel %vm985, %v1002, %v1001
    %v1004 = vrot.slane %v860, 3
    %v1005 = vsel %vm988, %v1004, %v1003
    %v1006 = vrot.slane %v906, 2
    %v1007 = vsel %vm991, %v1006, %v1005
    %v1008 = vrot.slane %v952, 1
    %v1009 = vsel %vm994, %v1008, %v1007
    %v1012 = vadd.f32 %v957, %v995
    %v1013 = vadd.f32 %v958, %v1009
    %1014 = vst [vmem:[#allocation2] sm:$0xff] %v1012
    %1015 = vst [vmem:[#allocation2 + $0x8] sm:$0xff] %v1013
    %v1016 = vld [vmem:[#allocation3] sm:$0xff]
    %v1017 = vld [vmem:[#allocation3 + $0x8] sm:$0xff]
    %v1018 = vsel %vm219, %v85, 0.0
    %1019 = vadd.xlane.f32.xlu0 %v1018
    %v1020 = vpop.xlane.xlu0 %1019
    %v1021 = vsel %vm219, %v86, 0.0
    %1022 = vadd.xlane.f32.xlu0 %v1021
    %v1023 = vpop.xlane.xlu0 %1022
    %v1024 = vadd.f32 %v1016, %v1020
    %v1025 = vadd.f32 %v1017, %v1023
    %vm1026 = vcmask 7168
    %1027 = vst.msk [vmem:[#allocation3] sm:$0xff] %vm1026, %v1024
    %1028 = vst.msk [vmem:[#allocation3 + $0x8] sm:$0xff] %vm1026, %v1025
    // Predicated region
    $region34: #{tpu_custom_call.1} parent=1 // pred_check
      %p1029 = pneg %p60
    $region35: #{tpu_custom_call.1} parent=1 // pred_check_branch
      %1031 = sbr.rel (%p1029) target = $region37
    $region36: #{tpu_custom_call.1} parent=1 // pred_region
      %v1032 = vld [vmem:[#allocation3] sm:$0xff]
      %v1033 = vld [vmem:[#allocation3 + $0x8] sm:$0xff]
      %v1034 = vmax.f32 %v1032, 1e-09
      %v1035 = vmax.f32 %v1033, 1e-09
      %v1036 = vrcp.pop %v1034
      %v1037 = vrcp.pop %v1035
      %v1038 = vld [vmem:[#allocation2] sm:$0xff]
      %v1039 = vld [vmem:[#allocation2 + $0x8] sm:$0xff]
      %1041 = vset.pattern.permute.xlu0 0
      %1042 = vperm.xlu0 %1041, %v1036
      %v1043 = vpop.permute.xlu0 %1042
      %1046 = vset.pattern.permute.xlu0 0
      %1047 = vperm.xlu0 %1046, %v1037
      %v1048 = vpop.permute.xlu0 %1047
      %v1050 = vmul.f32 %v1038, %v1043
      %v1051 = vmul.f32 %v1039, %v1048
      %v1052 = vmul.f32 %v1050, %v1050
      %v1053 = vmul.f32 %v1051, %v1051
      %1054 = vadd.xlane.f32.xlu0 %v1052
      %v1055 = vpop.xlane.xlu0 %1054
      %1056 = vadd.xlane.f32.xlu0 %v1053
      %v1057 = vpop.xlane.xlu0 %1056
      %v1058 = vmax.f32 %v1055, 1e-24
      %v1059 = vmax.f32 %v1057, 1e-24
      %v1060 = vrsqrt.pop %v1058
      %v1061 = vrsqrt.pop %v1059
      %v1062 = vmul.f32 %v1050, %v1060
      %v1063 = vmul.f32 %v1051, %v1061
      %v1064 = vsub.f32 %v1063, %v1062
      %v1065 = vld [vmem:[#allocation9] sm:$0xff]
      %v1066 = vld [vmem:[#allocation9 + $0x8] sm:$0xff]
      %v1067 = vld [vmem:[#allocation9 + $0x10] sm:$0xff]
      %v1068 = vld [vmem:[#allocation9 + $0x18] sm:$0xff]
      %v1069 = vld [vmem:[#allocation9 + $0x20] sm:$0xff]
      %v1070 = vld [vmem:[#allocation9 + $0x28] sm:$0xff]
      %v1071 = vld [vmem:[#allocation9 + $0x30] sm:$0xff]
      %v1072 = vld [vmem:[#allocation9 + $0x38] sm:$0xff]
      %v1073 = vld [vmem:[#allocation9 + $0x40] sm:$0xff]
      %v1074 = vld [vmem:[#allocation9 + $0x48] sm:$0xff]
      %v1075 = vld [vmem:[#allocation9 + $0x50] sm:$0xff]
      %v1076 = vld [vmem:[#allocation9 + $0x58] sm:$0xff]
      %v1077 = vld [vmem:[#allocation9 + $0x60] sm:$0xff]
      %v1078 = vld [vmem:[#allocation9 + $0x68] sm:$0xff]
      %v1079 = vld [vmem:[#allocation9 + $0x70] sm:$0xff]
      %v1080 = vld [vmem:[#allocation9 + $0x78] sm:$0xff]
      %v1081 = vld [vmem:[%s3] sm:$0x1]
      %v1083 = vlaneseq
      %v1084 = vshrl.u32 %v1083, 7
      %v1085 = vsub.s32 0, %v1084
      %v1086 = vrot.slane %v1081, %v1085
      %1088 = vmatprep.subr.mxu0 0.0
      %1089 = vmatpush1.msra.mxu0 %v1080
      %1090 = vmatprep.subr.mxu0 0.0
      %1091 = vmatpush1.msra.mxu0 %v1079
      %1092 = vmatprep.subr.mxu0 0.0
      %1093 = vmatpush1.msra.mxu0 %v1078
      %1094 = vmatprep.subr.mxu0 0.0
      %1095 = vmatpush1.msra.mxu0 %v1077
      %1096 = vmatprep.subr.mxu0 0.0
      %1097 = vmatpush1.msra.mxu0 %v1076
      %1098 = vmatprep.subr.mxu0 0.0
      %1099 = vmatpush1.msra.mxu0 %v1075
      %1100 = vmatprep.subr.mxu0 0.0
      %1101 = vmatpush1.msra.mxu0 %v1074
      %1102 = vmatprep.subr.mxu0 0.0
      %1103 = vmatpush1.msra.mxu0 %v1073
      %1104 = vmatprep.subr.mxu0 0.0
      %1105 = vmatpush1.msra.mxu0 %v1072
      %1106 = vmatprep.subr.mxu0 0.0
      %1107 = vmatpush1.msra.mxu0 %v1071
      %1108 = vmatprep.subr.mxu0 0.0
      %1109 = vmatpush1.msra.mxu0 %v1070
      %1110 = vmatprep.subr.mxu0 0.0
      %1111 = vmatpush1.msra.mxu0 %v1069
      %1112 = vmatprep.subr.mxu0 0.0
      %1113 = vmatpush1.msra.mxu0 %v1068
      %1114 = vmatprep.subr.mxu0 0.0
      %1115 = vmatpush1.msra.mxu0 %v1067
      %1116 = vmatprep.subr.mxu0 0.0
      %1117 = vmatpush1.msra.mxu0 %v1066
      %1118 = vmatprep.subr.mxu0 0.0
      %1119 = vmatpush1.msra.mxu0 %v1065
      %1120 = vmatprep.subr.mxu0 0.0
      %1121 = vmatpush2.msra.mxu0 0.0
      %1122 = vmatprep.subr.mxu0 0.0
      %1123 = vmatpush2.msra.mxu0 0.0
      %1124 = vmatprep.subr.mxu0 0.0
      %1125 = vmatpush2.msra.mxu0 0.0
      %1126 = vmatprep.subr.mxu0 0.0
      %1127 = vmatpush2.msra.mxu0 0.0
      %1128 = vmatprep.subr.mxu0 0.0
      %1129 = vmatpush2.msra.mxu0 0.0
      %1130 = vmatprep.subr.mxu0 0.0
      %1131 = vmatpush2.msra.mxu0 0.0
      %1132 = vmatprep.subr.mxu0 0.0
      %1133 = vmatpush2.msra.mxu0 0.0
      %1134 = vmatprep.subr.mxu0 0.0
      %1135 = vmatpush2.msra.mxu0 0.0
      %1136 = vmatprep.subr.mxu0 0.0
      %1137 = vmatpush2.msra.mxu0 0.0
      %1138 = vmatprep.subr.mxu0 0.0
      %1139 = vmatpush2.msra.mxu0 0.0
      %1140 = vmatprep.subr.mxu0 0.0
      %1141 = vmatpush2.msra.mxu0 0.0
      %1142 = vmatprep.subr.mxu0 0.0
      %1143 = vmatpush2.msra.mxu0 0.0
      %1144 = vmatprep.subr.mxu0 0.0
      %1145 = vmatpush2.msra.mxu0 0.0
      %1146 = vmatprep.subr.mxu0 0.0
      %1147 = vmatpush2.msra.mxu0 0.0
      %1148 = vmatprep.subr.mxu0 0.0
      %1149 = vmatpush2.msra.mxu0 0.0
      %1150 = vmatprep.subr.mxu0 0.0
      %1151 = vmatpush2.msra.mxu0 0.0
      %1152 = vmatprep.mubr.f32.mxu0 0.0
      %1153 = vmatmul.mubr.f32.gmra.mxu0 %v1064
      %v1154 = vpop.f32.mrf.mxu0
      %v1155 = vadd.f32 %v1086, %v1154
      %v1156 = vpop.f32.mrf.mxu0
      %1157 = vdwg.mxu0
      %1158 = vst [vmem:[#allocation10] sm:$0xff] %v1155
    $region37: #{tpu_custom_call.1} parent=1 // pred_fallthru
      _
    // Predicated region
    $region38: #{tpu_custom_call.1} parent=1 // pred_check
      _
    $region39: #{tpu_custom_call.1} parent=1 // pred_check_branch
      %1160 = sbr.rel (0) target = $region41
    $region40: #{tpu_custom_call.1} parent=1 // pred_region
      %s1162 = ssub.s32 128, 128
      %1163 = vsyncadd [#allocation6], %s1162
      %s1165 = sshll.u32 [#allocation10], 4
      %s1166 = int_to_ptr.vmem [resolvable:$true] %s1165
      %1168 = dma.vmem_to_hbm [thread:$0]  %s1166, 128, %s4, [#allocation6]
    $region41: #{tpu_custom_call.1} parent=1 // pred_fallthru
      _
    // Predicated region
    $region42: #{tpu_custom_call.1} parent=1 // pred_check
      _
    $region43: #{tpu_custom_call.1} parent=1 // pred_check_branch
      %1170 = sbr.rel (0) target = $region45
    $region44: #{tpu_custom_call.1} parent=1 // pred_region
      %1171 = dma.done [#allocation6], 128
    $region45: #{tpu_custom_call.1} parent=1 // pred_fallthru
      _
    %1172 = vsyncpa [#allocation5], 1
    %1173 = vsyncpa [#allocation8], 1
    %1174 = vsyncpa [#allocation6], 1

</llo_original>
